<compile_context>
chip_gen: v7x
topology: tpu7x:2x2x1
jax: 0.10.0
libtpu: 0.0.40
codegen_flags: <defaults>
</compile_context>

<pallas_src>
import functools

import jax
import jax.numpy as jnp
from jax.experimental import pallas as pl
from jax.experimental.pallas import tpu as pltpu

LN_EPS = 1e-5  # PyTorch nn.LayerNorm default


def _prenorm_linear_kernel(x_ref, gamma_ref, beta_ref, w_ref, b_ref, o_ref,
                           normed_ref):
    """Fused LayerNorm(D) -> Linear(D, Do) on one (TM, D) x (D, TN) tile pair.

    x_ref:      (TM, D)   token tile        (same block for every j)
    gamma_ref:  (1, D)    LayerNorm weight  (grid-invariant, single-buffered)
    beta_ref:   (1, D)    LayerNorm bias    (grid-invariant, single-buffered)
    w_ref:      (D, TN)   Linear weight, already transposed to (in, out)
    b_ref:      (1, TN)   Linear bias tile
    o_ref:      (TM, TN)
    normed_ref: (TM, D)   VMEM scratch: LayerNorm(x) for the current M tile,
                          computed once at j == 0 and reused for all N tiles.
    """
    j = pl.program_id(1)

    @pl.when(j == 0)
    def _():
        # LayerNorm statistics in f32 (biased variance, eps inside rsqrt —
        # matches PyTorch nn.LayerNorm).
        # TODO(synk): one-pass E[x]/E[x^2] stats would save a VPU pass on
        # VALU-bound generations (v5e); two-pass kept for numerical parity.
        x = x_ref[...].astype(jnp.float32)
        mean = jnp.mean(x, axis=-1, keepdims=True)
        xc = x - mean
        var = jnp.mean(xc * xc, axis=-1, keepdims=True)
        inv = jax.lax.rsqrt(var + LN_EPS)
        normed = (xc * inv) * gamma_ref[...].astype(jnp.float32) \
            + beta_ref[...].astype(jnp.float32)
        normed_ref[...] = normed.astype(normed_ref.dtype)

    # RHS is already (K, N): plain MXU matmul with f32 accumulation.
    y = jnp.dot(normed_ref[...], w_ref[...], preferred_element_type=jnp.float32)
    y = y + b_ref[...].astype(jnp.float32)
    o_ref[...] = y.astype(o_ref.dtype)


def _round_down(v, m):
    return max(m, (v // m) * m)


@functools.partial(jax.jit, static_argnames=("tm", "matmul_in_bf16"))
def prenorm(x, gamma, beta, w, b, *, tm=None, matmul_in_bf16=False):
    """x: (B, N, D); returns fn(LayerNorm(x)) with fn = Linear(D, Do).

    gamma, beta: (D,)  LayerNorm affine params.
    w: (Do, D)  Linear weight in PyTorch (out, in) layout.
    b: (Do,)    Linear bias.
    tm: token-tile size (auto from VMEM capacity when None).
    matmul_in_bf16: feed the MXU bf16 operands (f32 LN stats / f32 accumulate).
    """
    B, N, D = x.shape
    Do = w.shape[0]
    M = B * N
    x2 = x.reshape(M, D)

    mat_dtype = jnp.bfloat16 if matmul_in_bf16 else w.dtype

    # Wrapper-side relayout: (Do, D) -> (D, Do_p). One HBM transpose per call
    # instead of a transposed-RHS contraction inside the kernel. Lane-dense
    # pad of Do to a multiple of 128 (unmasked stores, full MXU N); padded
    # columns are zero and sliced off afterwards.
    # TODO(synk): fold gamma into W (W' = diag(gamma)·W, b' = b + beta·W) to
    # cut a full (TM, D) VPU pass where VALU is the binding slot (v5e).
    Do_p = ((Do + 127) // 128) * 128
    wt = w.T.astype(mat_dtype)
    bp = b
    if Do_p != Do:
        wt = jnp.pad(wt, ((0, 0), (0, Do_p - Do)))
        bp = jnp.pad(bp, ((0, Do_p - Do),))

    # ---- Generation-aware capacity plan -----------------------------------
    try:
        vmem_cap = int(pltpu.get_tpu_info().vmem_capacity_bytes)
    except Exception:  # conservative fallback (v7x-sized per-core VMEM)
        vmem_cap = 64 * 1024 * 1024
    # ~38 MiB on v7x (64 MiB/TC), ~76 MiB on v5e/v6e (128 MiB).
    budget = max(24 * 2**20, min(int(vmem_cap * 0.6), vmem_cap - 16 * 2**20))

    itemsize = x.dtype.itemsize
    mat_itemsize = jnp.dtype(mat_dtype).itemsize
    sublane = 16 if x.dtype == jnp.bfloat16 else 8

    if tm is None:
        tm = 1024 if vmem_cap > 96 * 2**20 else 512
    tm = min(tm, M)
    if tm % sublane != 0:
        # Round down to a sublane multiple (keeps the M grid / pipelining);
        # only fall back to the full extent when M itself is tiny.
        tm = _round_down(tm, sublane) if M >= sublane else M
    # On small-VMEM 2-TensorCore parts (v7x) make sure both cores get work.
    if vmem_cap <= 64 * 2**20:
        while pl.cdiv(M, tm) < 2 and tm >= 2 * sublane:
            tm = _round_down(tm // 2, sublane)

    def vmem_est(tm_, tn_, w_bufs):
        return (
            2 * tm_ * D * itemsize               # x tile (double-buffered)
            + 2 * tm_ * tn_ * itemsize           # out tile (double-buffered)
            + w_bufs * D * tn_ * mat_itemsize    # weight block(s)
            + tm_ * D * mat_itemsize             # normed scratch
            + (2 * D + 2 * tn_) * 4              # gamma / beta / bias
            + 4 * tm_ * max(D, tn_) * 4          # f32 temporaries headroom
        )

    # The estimate drives the plan: shrink the N tile (stream the weight)
    # first, then the M tile, instead of only clamping vmem_limit_bytes.
    tn = Do_p
    while True:
        w_bufs = 1 if tn == Do_p else 2
        if vmem_est(tm, tn, w_bufs) <= budget:
            break
        if tn > 256:
            tn = _round_down(tn // 2, 256)
        elif tn > 128:
            tn = 128
        elif tm > sublane:
            tm = _round_down(tm // 2, sublane)
        else:
            break  # degrade gracefully; let Mosaic spill rather than fail here

    grid_m = pl.cdiv(M, tm)
    grid_n = pl.cdiv(Do_p, tn)
    w_bufs = 1 if grid_n == 1 else 2
    vmem_limit = int(min(budget, max(2 * vmem_est(tm, tn, w_bufs), 32 * 2**20)))

    # Grid-invariant operands are single-buffered (constant index_map =>
    # double-buffering them is pure VMEM waste). The weight is streamed
    # (default double-buffering) only when it is actually tiled over Do.
    if grid_n == 1:
        w_spec = pl.BlockSpec((D, tn), lambda i, j: (0, j),
                              pipeline_mode=pl.Buffered(1))
    else:
        w_spec = pl.BlockSpec((D, tn), lambda i, j: (0, j))

    out2 = pl.pallas_call(
        _prenorm_linear_kernel,
        out_shape=jax.ShapeDtypeStruct((M, Do_p), x.dtype),
        grid_spec=pltpu.PrefetchScalarGridSpec(
            num_scalar_prefetch=0,
            grid=(grid_m, grid_n),
            in_specs=[
                pl.BlockSpec((tm, D), lambda i, j: (i, 0)),      # x tile
                pl.BlockSpec((1, D), lambda i, j: (0, 0),
                             pipeline_mode=pl.Buffered(1)),      # gamma
                pl.BlockSpec((1, D), lambda i, j: (0, 0),
                             pipeline_mode=pl.Buffered(1)),      # beta
                w_spec,                                          # W (D, TN)
                pl.BlockSpec((1, tn), lambda i, j: (0, j)),      # bias tile
            ],
            out_specs=pl.BlockSpec((tm, tn), lambda i, j: (i, j)),
            scratch_shapes=[pltpu.VMEM((tm, D), mat_dtype)],     # normed cache
        ),
        compiler_params=pltpu.CompilerParams(
            dimension_semantics=("parallel", "arbitrary"),
            vmem_limit_bytes=vmem_limit,
        ),
    )(x2, gamma.reshape(1, D), beta.reshape(1, D), wt, bp.reshape(1, Do_p))

    if Do_p != Do:
        out2 = out2[:, :Do]  # perf note: extra HBM copy only when Do not 128-aligned
    return out2.reshape(B, N, Do)


def _reference(x, gamma, beta, w, b):
    mean = jnp.mean(x, axis=-1, keepdims=True)
    var = jnp.mean((x - mean) ** 2, axis=-1, keepdims=True)
    normed = (x - mean) / jnp.sqrt(var + LN_EPS) * gamma + beta
    return normed @ w.T + b


if __name__ == "__main__":
    # Small transformer-ish shapes: batch=2, seq=8, dim=32.
    B, N, D = 2, 8, 32
    key = jax.random.PRNGKey(0)
    kx, kw, kb = jax.random.split(key, 3)

    x = jax.random.normal(kx, (B, N, D), dtype=jnp.float32)

    # LayerNorm params (PyTorch default init: weight=1, bias=0).
    gamma = jnp.ones((D,), dtype=jnp.float32)
    beta = jnp.zeros((D,), dtype=jnp.float32)

    # fn = Linear(D, D) with deterministic synthetic weights (PyTorch (out, in)).
    w = jax.random.normal(kw, (D, D), dtype=jnp.float32) * 0.05
    b = jax.random.normal(kb, (D,), dtype=jnp.float32) * 0.01

    # tm=8 => grid of 2 token tiles: exercises the tiled, pipelined, parallel
    # path plus the per-M-tile normed-scratch reuse.
    out = prenorm(x, gamma, beta, w, b, tm=8)
    jax.block_until_ready(out)

    ref = _reference(x, gamma, beta, w, b)
    assert out.shape == (B, N, D)
    assert jnp.allclose(out, ref, atol=1e-4, rtol=1e-4)

    # Also run the auto-planned path once (tm chosen from VMEM capacity).
    out_auto = prenorm(x, gamma, beta, w, b)
    jax.block_until_ready(out_auto)
    assert jnp.allclose(out_auto, ref, atol=1e-4, rtol=1e-4)

    print("KERNEL_OK")
</pallas_src>

<mosaic_0001>
module attributes {stable_mosaic.version = 11 : i64} {
  func.func @_prenorm_linear_kernel(%arg0: i32, %arg1: i32, %arg2: memref<8x32xf32, #tpu.memory_space<vmem>>, %arg3: memref<1x32xf32, #tpu.memory_space<vmem>>, %arg4: memref<1x32xf32, #tpu.memory_space<vmem>>, %arg5: memref<32x128xf32, #tpu.memory_space<vmem>>, %arg6: memref<1x128xf32, #tpu.memory_space<vmem>>, %arg7: memref<8x128xf32, #tpu.memory_space<vmem>>, %arg8: memref<8x32xf32, #tpu.memory_space<vmem>>) attributes {dimension_semantics = [#tpu.dimension_semantics<parallel>, #tpu.dimension_semantics<arbitrary>], iteration_bounds = array<i64: 2, 1>, scalar_prefetch = 0 : i64, scratch_operands = 1 : i64, tpu.core_type = #tpu.core_type<tc>, window_params = [{transform_indices = @transform_0, window_bounds = array<i64: 8, 32>}, {pipeline_mode = #tpu.pipeline_mode<synchronous>, transform_indices = @transform_1, window_bounds = array<i64: 1, 32>}, {pipeline_mode = #tpu.pipeline_mode<synchronous>, transform_indices = @transform_2, window_bounds = array<i64: 1, 32>}, {pipeline_mode = #tpu.pipeline_mode<synchronous>, transform_indices = @transform_3, window_bounds = array<i64: 32, 128>}, {transform_indices = @transform_4, window_bounds = array<i64: 1, 128>}, {transform_indices = @transform_5, window_bounds = array<i64: 8, 128>}]} {
    %c0_i32 = arith.constant 0 : i32
    %0 = arith.cmpi eq, %arg1, %c0_i32 : i32
    %1 = arith.extui %0 : i1 to i32
    %c0_i32_0 = arith.constant 0 : i32
    %2 = arith.cmpi ne, %1, %c0_i32_0 : i32
    scf.if %2 {
      %c0_8 = arith.constant 0 : index
      %c0_9 = arith.constant 0 : index
      %10 = vector.load %arg2[%c0_8, %c0_9] : memref<8x32xf32, #tpu.memory_space<vmem>>, vector<8x32xf32>
      %cst_10 = arith.constant dense<0.000000e+00> : vector<8xf32>
      %11 = vector.multi_reduction <add>, %10, %cst_10 [1] : vector<8x32xf32> to vector<8xf32>
      %12 = vector.shape_cast %11 : vector<8xf32> to vector<8x1xf32>
      %cst_11 = arith.constant 3.200000e+01 : f32
      %13 = vector.broadcast %cst_11 : f32 to vector<8x1xf32>
      %14 = arith.divf %12, %13 : vector<8x1xf32>
      %15 = vector.broadcast %14 : vector<8x1xf32> to vector<8x32xf32>
      %16 = arith.subf %10, %15 : vector<8x32xf32>
      %17 = arith.mulf %16, %16 : vector<8x32xf32>
      %cst_12 = arith.constant dense<0.000000e+00> : vector<8xf32>
      %18 = vector.multi_reduction <add>, %17, %cst_12 [1] : vector<8x32xf32> to vector<8xf32>
      %19 = vector.shape_cast %18 : vector<8xf32> to vector<8x1xf32>
      %cst_13 = arith.constant 3.200000e+01 : f32
      %20 = vector.broadcast %cst_13 : f32 to vector<8x1xf32>
      %21 = arith.divf %19, %20 : vector<8x1xf32>
      %cst_14 = arith.constant 9.99999974E-6 : f32
      %22 = vector.broadcast %cst_14 : f32 to vector<8x1xf32>
      %23 = arith.addf %21, %22 : vector<8x1xf32>
      %24 = math.rsqrt %23 : vector<8x1xf32>
      %25 = vector.broadcast %24 : vector<8x1xf32> to vector<8x32xf32>
      %26 = arith.mulf %16, %25 : vector<8x32xf32>
      %c0_15 = arith.constant 0 : index
      %c0_16 = arith.constant 0 : index
      %27 = vector.load %arg3[%c0_15, %c0_16] : memref<1x32xf32, #tpu.memory_space<vmem>>, vector<1x32xf32>
      %28 = vector.broadcast %27 : vector<1x32xf32> to vector<8x32xf32>
      %29 = arith.mulf %26, %28 : vector<8x32xf32>
      %c0_17 = arith.constant 0 : index
      %c0_18 = arith.constant 0 : index
      %30 = vector.load %arg4[%c0_17, %c0_18] : memref<1x32xf32, #tpu.memory_space<vmem>>, vector<1x32xf32>
      %31 = vector.broadcast %30 : vector<1x32xf32> to vector<8x32xf32>
      %32 = arith.addf %29, %31 : vector<8x32xf32>
      %c0_19 = arith.constant 0 : index
      %c0_20 = arith.constant 0 : index
      %33 = vector.load %arg8[%c0_19, %c0_20] : memref<8x32xf32, #tpu.memory_space<vmem>>, vector<8x32xf32>
      tpu.vector_store %arg8[%c0_19, %c0_20], %32 {strides = array<i32>} : memref<8x32xf32, #tpu.memory_space<vmem>>, vector<8x32xf32>,
    } else {
    }
    %c0 = arith.constant 0 : index
    %c0_1 = arith.constant 0 : index
    %3 = vector.load %arg8[%c0, %c0_1] : memref<8x32xf32, #tpu.memory_space<vmem>>, vector<8x32xf32>
    %c0_2 = arith.constant 0 : index
    %c0_3 = arith.constant 0 : index
    %4 = vector.load %arg5[%c0_2, %c0_3] : memref<32x128xf32, #tpu.memory_space<vmem>>, vector<32x128xf32>
    %cst = arith.constant dense<0.000000e+00> : vector<8x128xf32>
    %5 = tpu.matmul %3, %4, %cst {dimension_numbers = #tpu.dot_dimension_numbers<[1], [0], [0], [1], [0, 0, 1, 1], [], []>} : vector<8x32xf32>, vector<32x128xf32>, vector<8x128xf32> -> vector<8x128xf32>
    %c0_4 = arith.constant 0 : index
    %c0_5 = arith.constant 0 : index
    %6 = vector.load %arg6[%c0_4, %c0_5] : memref<1x128xf32, #tpu.memory_space<vmem>>, vector<1x128xf32>
    %7 = vector.broadcast %6 : vector<1x128xf32> to vector<8x128xf32>
    %8 = arith.addf %5, %7 : vector<8x128xf32>
    %c0_6 = arith.constant 0 : index
    %c0_7 = arith.constant 0 : index
    %9 = vector.load %arg7[%c0_6, %c0_7] : memref<8x128xf32, #tpu.memory_space<vmem>>, vector<8x128xf32>
    tpu.vector_store %arg7[%c0_6, %c0_7], %8 {strides = array<i32>} : memref<8x128xf32, #tpu.memory_space<vmem>>, vector<8x128xf32>,
    return
  }
  func.func @transform_0(%arg0: i32, %arg1: i32) -> (i32, i32) {
    %c0_i32 = arith.constant 0 : i32
    %c0_i32_0 = arith.constant 0 : i32
    return %arg0, %c0_i32 : i32, i32
  }
  func.func @transform_1(%arg0: i32, %arg1: i32) -> (i32, i32) {
    %c0_i32 = arith.constant 0 : i32
    %c0_i32_0 = arith.constant 0 : i32
    %c0_i32_1 = arith.constant 0 : i32
    return %c0_i32, %c0_i32_0 : i32, i32
  }
  func.func @transform_2(%arg0: i32, %arg1: i32) -> (i32, i32) {
    %c0_i32 = arith.constant 0 : i32
    %c0_i32_0 = arith.constant 0 : i32
    %c0_i32_1 = arith.constant 0 : i32
    return %c0_i32, %c0_i32_0 : i32, i32
  }
  func.func @transform_3(%arg0: i32, %arg1: i32) -> (i32, i32) {
    %c0_i32 = arith.constant 0 : i32
    %c0_i32_0 = arith.constant 0 : i32
    return %c0_i32, %arg1 : i32, i32
  }
  func.func @transform_4(%arg0: i32, %arg1: i32) -> (i32, i32) {
    %c0_i32 = arith.constant 0 : i32
    %c0_i32_0 = arith.constant 0 : i32
    return %c0_i32, %arg1 : i32, i32
  }
  func.func @transform_5(%arg0: i32, %arg1: i32) -> (i32, i32) {
    %c0_i32 = arith.constant 0 : i32
    return %arg0, %arg1 : i32, i32
  }
}

</mosaic_0001>

<llo_original>
// kernel: prenorm.1
$region0: #{prenorm.1}
  #allocation0 [shape = 'u32[]', space=smem, size = 0x4, offset = 0x4, fixed_abs, tag = 'smem constant byte address 0x4 - core index']
  #allocation1 [shape = 'u32[144,128]{1,0:T(1,128)}', space=vmem, size = 0x12000, scoped, tag = 'internal scratch']
  #allocation2 [shape = 'f32[8,32]{1,0:T(8,128)}', space=vmem, size = 0x1000, scoped, tag = 'scratch operand']
  %s0 = inlined_call_operand.vmem [shape: f32[16,32], index: 0, kind: input, shape index: {}]
  %s1 = inlined_call_operand.vmem [shape: f32[1,32], index: 1, kind: input, shape index: {}]
  %s2 = inlined_call_operand.vmem [shape: f32[1,32], index: 2, kind: input, shape index: {}]
  %s3 = inlined_call_operand.vmem [shape: f32[32,128], index: 3, kind: input, shape index: {}]
  %s4 = inlined_call_operand.vmem [shape: f32[1,128], index: 4, kind: input, shape index: {}]
  %s5 = inlined_call_operand.vmem [shape: f32[16,128], index: 5, kind: output, shape index: {}]
  %s6 = sld [smem:[#allocation0]]
  $region57: #{prenorm.1} parent=0
    _
  %s8 = ssub.s32 1, %s6
  %s9 = scalar_select 0, %s8, %s6
  loop: start=0, step=1, limit=4
  $region2: #{prenorm.1} parent=0 // loop_pre_header
    _
  $region3: #{prenorm.1} parent=0 // loop_header
    %s11 = sphi 0, %s15
    %p12 = scmp.ge.s32.totalorder %s11, 4
    %s18 = sphi 0, %s30
    %s19 = sphi 0, %s26
    %s20 = sphi 0, %s18
    %s21 = sphi 0, %s19
    %s22 = sphi 0, %s20
    %s23 = sphi 0, %s21
    %s33 = sphi 0, %s35
    %s36 = sphi 0, %s33
    %s37 = sphi 0, %s36
    %s53 = sphi 0, %s37
    %s57 = sphi 0, %s57
    %s59 = sphi 0, %s57
    %s60 = sphi 0, %s59
    %s74 = sphi 0, %s60
    %s78 = sphi 0, %s78
    %s80 = sphi 0, %s78
    %s81 = sphi 0, %s80
    %s95 = sphi 0, %s81
    %s101 = sphi 0, %s103
    %s104 = sphi 0, %s101
    %s105 = sphi 0, %s104
    %s121 = sphi 0, %s105
    %s127 = sphi 0, %s129
    %s130 = sphi 0, %s127
    %s131 = sphi 0, %s130
    %s147 = sphi 0, %s131
    %s155 = sphi 0, %s157
    %s158 = sphi 0, %s155
    %s159 = sphi 0, %s158
    %s175 = sphi 0, %s159
  $region4: #{prenorm.1} parent=0 // loop_header_branch
    %14 = sbr.rel (%p12) target = $region8
  $region5: #{prenorm.1} parent=0 // loop_body
    %s16 = ssub.s32 %s11, 1
    %s17 = ssub.s32 %s11, 2
    %s24 = sadd.s32 1, %s19
    %p25 = scmp.ge.s32.totalorder %s24, 1
    %s26 = scalar_select %p25, 0, %s24
    %s27 = sadd.s32 1, %s18
    %s28 = scalar_select %p25, %s27, %s18
    %p29 = scmp.ge.s32.totalorder %s28, 2
    %s30 = scalar_select %p29, 0, %s28
    %s31 = ssub.s32 %s18, %s30
    %p32 = scmp.eq.s32.totalorder %s31, 0
    %s34 = sadd.s32 %s33, 1
    %s35 = scalar_select %p32, %s33, %s34
    %p38 = pneg %p32
    %p39 = scmp.eq.s32.totalorder %s11, 1
    %p40 = por %p38, %p39
    %p41 = scmp.ne.s32.totalorder %s33, %s36
    %p42 = scmp.eq.s32.totalorder %s11, 0
    %p43 = por %p41, %p42
    %p44 = scmp.ne.s32.totalorder %s33, %s36
    %p45 = scmp.eq.s32.totalorder %s16, 1
    %p46 = por %p44, %p45
    %p47 = scmp.ne.s32.totalorder %s36, %s37
    %p48 = scmp.eq.s32.totalorder %s16, 0
    %p49 = por %p47, %p48
    %p50 = scmp.ne.s32.totalorder %s36, %s37
    %p51 = scmp.eq.s32.totalorder %s17, 1
    %p52 = por %p50, %p51
    %p54 = scmp.ne.s32.totalorder %s37, %s53
    %p55 = scmp.eq.s32.totalorder %s17, 0
    %p56 = por %p54, %p55
    %s58 = sadd.s32 %s57, 1
    %p61 = scmp.eq.s32.totalorder %s11, 1
    %p62 = scmp.ne.s32.totalorder %s57, %s59
    %p63 = scmp.eq.s32.totalorder %s11, 0
    %p64 = por %p62, %p63
    %p65 = scmp.ne.s32.totalorder %s57, %s59
    %p66 = scmp.eq.s32.totalorder %s16, 1
    %p67 = por %p65, %p66
    %p68 = scmp.ne.s32.totalorder %s59, %s60
    %p69 = scmp.eq.s32.totalorder %s16, 0
    %p70 = por %p68, %p69
    %p71 = scmp.ne.s32.totalorder %s59, %s60
    %p72 = scmp.eq.s32.totalorder %s17, 1
    %p73 = por %p71, %p72
    %p75 = scmp.ne.s32.totalorder %s60, %s74
    %p76 = scmp.eq.s32.totalorder %s17, 0
    %p77 = por %p75, %p76
    %s79 = sadd.s32 %s78, 1
    %p82 = scmp.eq.s32.totalorder %s11, 1
    %p83 = scmp.ne.s32.totalorder %s78, %s80
    %p84 = scmp.eq.s32.totalorder %s11, 0
    %p85 = por %p83, %p84
    %p86 = scmp.ne.s32.totalorder %s78, %s80
    %p87 = scmp.eq.s32.totalorder %s16, 1
    %p88 = por %p86, %p87
    %p89 = scmp.ne.s32.totalorder %s80, %s81
    %p90 = scmp.eq.s32.totalorder %s16, 0
    %p91 = por %p89, %p90
    %p92 = scmp.ne.s32.totalorder %s80, %s81
    %p93 = scmp.eq.s32.totalorder %s17, 1
    %p94 = por %p92, %p93
    %p96 = scmp.ne.s32.totalorder %s81, %s95
    %p97 = scmp.eq.s32.totalorder %s17, 0
    %p98 = por %p96, %p97
    %s99 = ssub.s32 %s19, %s26
    %p100 = scmp.eq.s32.totalorder %s99, 0
    %s102 = sadd.s32 %s101, 1
    %s103 = scalar_select %p100, %s101, %s102
    %p106 = pneg %p100
    %p107 = scmp.eq.s32.totalorder %s11, 1
    %p108 = por %p106, %p107
    %p109 = scmp.ne.s32.totalorder %s101, %s104
    %p110 = scmp.eq.s32.totalorder %s11, 0
    %p111 = por %p109, %p110
    %p112 = scmp.ne.s32.totalorder %s101, %s104
    %p113 = scmp.eq.s32.totalorder %s16, 1
    %p114 = por %p112, %p113
    %p115 = scmp.ne.s32.totalorder %s104, %s105
    %p116 = scmp.eq.s32.totalorder %s16, 0
    %p117 = por %p115, %p116
    %p118 = scmp.ne.s32.totalorder %s104, %s105
    %p119 = scmp.eq.s32.totalorder %s17, 1
    %p120 = por %p118, %p119
    %p122 = scmp.ne.s32.totalorder %s105, %s121
    %p123 = scmp.eq.s32.totalorder %s17, 0
    %p124 = por %p122, %p123
    %s125 = ssub.s32 %s19, %s26
    %p126 = scmp.eq.s32.totalorder %s125, 0
    %s128 = sadd.s32 %s127, 1
    %s129 = scalar_select %p126, %s127, %s128
    %p132 = pneg %p126
    %p133 = scmp.eq.s32.totalorder %s11, 1
    %p134 = por %p132, %p133
    %p135 = scmp.ne.s32.totalorder %s127, %s130
    %p136 = scmp.eq.s32.totalorder %s11, 0
    %p137 = por %p135, %p136
    %p138 = scmp.ne.s32.totalorder %s127, %s130
    %p139 = scmp.eq.s32.totalorder %s16, 1
    %p140 = por %p138, %p139
    %p141 = scmp.ne.s32.totalorder %s130, %s131
    %p142 = scmp.eq.s32.totalorder %s16, 0
    %p143 = por %p141, %p142
    %p144 = scmp.ne.s32.totalorder %s130, %s131
    %p145 = scmp.eq.s32.totalorder %s17, 1
    %p146 = por %p144, %p145
    %p148 = scmp.ne.s32.totalorder %s131, %s147
    %p149 = scmp.eq.s32.totalorder %s17, 0
    %p150 = por %p148, %p149
    %s151 = ssub.s32 %s18, %s30
    %s152 = ssub.s32 %s19, %s26
    %s153 = sor.u32 %s151, %s152
    %p154 = scmp.eq.s32.totalorder %s153, 0
    %s156 = sadd.s32 %s155, 1
    %s157 = scalar_select %p154, %s155, %s156
    %p160 = pneg %p154
    %p161 = scmp.eq.s32.totalorder %s11, 1
    %p162 = por %p160, %p161
    %p163 = scmp.ne.s32.totalorder %s155, %s158
    %p164 = scmp.eq.s32.totalorder %s11, 0
    %p165 = por %p163, %p164
    %p166 = scmp.ne.s32.totalorder %s155, %s158
    %p167 = scmp.eq.s32.totalorder %s16, 1
    %p168 = por %p166, %p167
    %p169 = scmp.ne.s32.totalorder %s158, %s159
    %p170 = scmp.eq.s32.totalorder %s16, 0
    %p171 = por %p169, %p170
    %p172 = scmp.ne.s32.totalorder %s158, %s159
    %p173 = scmp.eq.s32.totalorder %s17, 1
    %p174 = por %p172, %p173
    %p176 = scmp.ne.s32.totalorder %s159, %s175
    %p177 = scmp.eq.s32.totalorder %s17, 0
    %p178 = por %p176, %p177
    %p179 = scmp.le.s32.totalorder 1, %s11
    %p180 = scmp.lt.s32.totalorder %s11, 3
    %p181 = pnand %p179, %p180
    %p182 = pneg %p181
    // Predicated region
    $region9: #{prenorm.1} parent=5 // pred_check
      _
    $region10: #{prenorm.1} parent=5 // pred_check_branch
      %184 = sbr.rel (%p181) target = $region12
    $region11: #{prenorm.1} parent=5 // pred_region
      %s185 = ssub.s32 %s11, 1
      // Predicated region
      $region13: #{prenorm.1} parent=11 // pred_check
        %p186 = pneg %p70
      $region14: #{prenorm.1} parent=11 // pred_check_branch
        %188 = sbr.rel (%p186) target = $region16
      $region15: #{prenorm.1} parent=11 // pred_region
        _
      $region16: #{prenorm.1} parent=11 // pred_fallthru
        _
      // Predicated region
      $region17: #{prenorm.1} parent=11 // pred_check
        %p189 = pneg %p91
      $region18: #{prenorm.1} parent=11 // pred_check_branch
        %191 = sbr.rel (%p189) target = $region20
      $region19: #{prenorm.1} parent=11 // pred_region
        _
      $region20: #{prenorm.1} parent=11 // pred_fallthru
        _
      // Predicated region
      $region21: #{prenorm.1} parent=11 // pred_check
        %p192 = pneg %p117
      $region22: #{prenorm.1} parent=11 // pred_check_branch
        %194 = sbr.rel (%p192) target = $region24
      $region23: #{prenorm.1} parent=11 // pred_region
        %p195 = scmp.lt.s32.totalorder %s21, 0
        %s196 = scalar_select %p195, %s21, 0
        %s197 = smul.addr %s196, 8
        %s198 = scalar_lea.vmem %s3, %s197
      $region24: #{prenorm.1} parent=11 // pred_fallthru
        _
      // Predicated region
      $region25: #{prenorm.1} parent=11 // pred_check
        %p199 = pneg %p143
      $region26: #{prenorm.1} parent=11 // pred_check_branch
        %201 = sbr.rel (%p199) target = $region28
      $region27: #{prenorm.1} parent=11 // pred_region
        %p202 = scmp.lt.s32.totalorder %s21, 0
        %s203 = scalar_select %p202, %s21, 0
        %s204 = scalar_lea.vmem %s4, %s203
      $region28: #{prenorm.1} parent=11 // pred_fallthru
        _
    $region12: #{prenorm.1} parent=5 // pred_fallthru
      _
    %p205 = scmp.lt.s32.totalorder %s11, 2
    // Predicated region
    $region29: #{prenorm.1} parent=5 // pred_check
      %p206 = pneg %p205
    $region30: #{prenorm.1} parent=5 // pred_check_branch
      %208 = sbr.rel (%p206) target = $region32
    $region31: #{prenorm.1} parent=5 // pred_region
      // Predicated region
      $region33: #{prenorm.1} parent=31 // pred_check
        %p209 = pneg %p43
      $region34: #{prenorm.1} parent=31 // pred_check_branch
        %211 = sbr.rel (%p209) target = $region36
      $region35: #{prenorm.1} parent=31 // pred_region
        %p212 = scmp.lt.s32.totalorder %s18, 1
        %s213 = scalar_select %p212, %s18, 1
        %s214 = smul.addr %s213, 8
        %s215 = scalar_lea.vmem %s0, %s214
      $region36: #{prenorm.1} parent=31 // pred_fallthru
        _
    $region32: #{prenorm.1} parent=5 // pred_fallthru
      _
    %p216 = scmp.le.s32.totalorder 1, %s11
    %p217 = scmp.lt.s32.totalorder %s11, 3
    %p218 = pnand %p216, %p217
    %p219 = pneg %p218
    // Predicated region
    $region37: #{prenorm.1} parent=5 // pred_check
      _
    $region38: #{prenorm.1} parent=5 // pred_check_branch
      %221 = sbr.rel (%p218) target = $region40
    $region39: #{prenorm.1} parent=5 // pred_region
      %s222 = ssub.s32 %s11, 1
      %p223 = scmp.lt.s32.totalorder %s20, 1
      %s224 = scalar_select %p223, %s20, 1
      %s225 = smul.addr %s224, 8
      %s226 = scalar_lea.vmem %s0, %s225
      %p227 = pneg %p49
      %p228 = pneg %p46
      %p229 = pneg %p70
      %p230 = pneg %p67
      %p231 = pneg %p91
      %p232 = pneg %p88
      %p233 = scmp.lt.s32.totalorder %s21, 0
      %s234 = scalar_select %p233, %s21, 0
      %s235 = smul.addr %s234, 8
      %s236 = scalar_lea.vmem %s3, %s235
      %p237 = pneg %p117
      %p238 = pneg %p114
      %p239 = scmp.lt.s32.totalorder %s21, 0
      %s240 = scalar_select %p239, %s21, 0
      %s241 = scalar_lea.vmem %s4, %s240
      %p242 = pneg %p143
      %p243 = pneg %p140
      %p244 = pneg %p171
      %p245 = pneg %p168
      %p246 = scmp.lt.s32.totalorder %s20, 1
      %s247 = scalar_select %p246, %s20, 1
      %p248 = scmp.lt.s32.totalorder %s21, 0
      %s249 = scalar_select %p248, %s21, 0
      %s250 = sadd.s32 %s249, %s247
      %s251 = smul.addr %s250, 8
      %s252 = scalar_lea.vmem %s5, %s251
      %p253 = scmp.lt.s32.totalorder %s20, 1
      %s254 = scalar_select %p253, %s20, 1
      %s255 = smul.addr %s254, 8
      %s256 = scalar_lea.vmem %s0, %s255
      %p257 = scmp.lt.s32.totalorder %s21, 0
      %s258 = scalar_select %p257, %s21, 0
      %s259 = smul.addr %s258, 8
      %s260 = scalar_lea.vmem %s3, %s259
      %p261 = scmp.lt.s32.totalorder %s21, 0
      %s262 = scalar_select %p261, %s21, 0
      %s263 = scalar_lea.vmem %s4, %s262
      %p264 = scmp.lt.s32.totalorder %s20, 1
      %s265 = scalar_select %p264, %s20, 1
      %p266 = scmp.lt.s32.totalorder %s21, 0
      %s267 = scalar_select %p266, %s21, 0
      %s268 = sadd.s32 %s267, %s265
      %s269 = smul.addr %s268, 8
      %s270 = scalar_lea.vmem %s5, %s269
      %p271 = scmp.eq.s32.totalorder %s21, 0
      // Predicated region
      $region41: #{prenorm.1} parent=39 // pred_check
        %p272 = pneg %p271
      $region42: #{prenorm.1} parent=39 // pred_check_branch
        %274 = sbr.rel (%p272) target = $region44
      $region43: #{prenorm.1} parent=39 // pred_region
        %v275 = vld [vmem:[%s256] sm:$0xff]
        %vm276 = vcmask 261120
        %v277 = vsel %vm276, %v275, 0.0
        %278 = vadd.xlane.f32.xlu0 %v277
        %v279 = vpop.xlane.xlu0 %278
        %v280 = vrcp.pop 32.0
        %v281 = vmul.f32 %v279, %v280
        %v282 = vsub.f32 %v275, %v281
        %v283 = vmul.f32 %v282, %v282
        %v284 = vsel %vm276, %v283, 0.0
        %285 = vadd.xlane.f32.xlu0 %v284
        %v286 = vpop.xlane.xlu0 %285
        %v287 = vmul.f32 %v286, %v280
        %v288 = vadd.f32 %v287, 1e-05
        %v289 = vrsqrt.pop %v288
        %v290 = vmul.f32 %v282, %v289
        %v291 = vld [vmem:[%s1] sm:$0x1]
        %v293 = vlaneseq
        %v294 = vshrl.u32 %v293, 7
        %v295 = vsub.s32 0, %v294
        %v296 = vrot.slane %v291, %v295
        %v298 = vmul.f32 %v290, %v296
        %v299 = vld [vmem:[%s2] sm:$0x1]
        %v301 = vlaneseq
        %v302 = vshrl.u32 %v301, 7
        %v303 = vsub.s32 0, %v302
        %v304 = vrot.slane %v299, %v303
        %v306 = vadd.f32 %v298, %v304
        %307 = vst.msk [vmem:[#allocation2] sm:$0xff] %vm276, %v306
      $region44: #{prenorm.1} parent=39 // pred_fallthru
        _
      %v308 = vld [vmem:[#allocation2] sm:$0xff]
      %v309 = vld [vmem:[%s260] sm:$0xff]
      %v310 = vld [vmem:[%s260 + $0x8] sm:$0xff]
      %v311 = vld [vmem:[%s260 + $0x10] sm:$0xff]
      %v312 = vld [vmem:[%s260 + $0x18] sm:$0xff]
      %v313 = vld [vmem:[%s263] sm:$0x1]
      %v315 = vlaneseq
      %v316 = vshrl.u32 %v315, 7
      %v317 = vsub.s32 0, %v316
      %v318 = vrot.slane %v313, %v317
      %vm320 = vcmask 261120
      %v322 = vsel %vm320, %v308, 0
      %324 = vmatprep.subr.mxu0 0.0
      %325 = vmatpush1.msra.mxu0 %v309
      %326 = vmatprep.subr.mxu0 0.0
      %327 = vmatpush1.msra.mxu0 %v310
      %328 = vmatprep.subr.mxu0 0.0
      %329 = vmatpush1.msra.mxu0 %v311
      %330 = vmatprep.subr.mxu0 0.0
      %331 = vmatpush1.msra.mxu0 %v312
      %332 = vmatprep.subr.mxu0 0.0
      %333 = vmatpush1.msra.mxu0 0.0
      %334 = vmatprep.subr.mxu0 0.0
      %335 = vmatpush1.msra.mxu0 0.0
      %336 = vmatprep.subr.mxu0 0.0
      %337 = vmatpush1.msra.mxu0 0.0
      %338 = vmatprep.subr.mxu0 0.0
      %339 = vmatpush1.msra.mxu0 0.0
      %340 = vmatprep.subr.mxu0 0.0
      %341 = vmatpush1.msra.mxu0 0.0
      %342 = vmatprep.subr.mxu0 0.0
      %343 = vmatpush1.msra.mxu0 0.0
      %344 = vmatprep.subr.mxu0 0.0
      %345 = vmatpush1.msra.mxu0 0.0
      %346 = vmatprep.subr.mxu0 0.0
      %347 = vmatpush1.msra.mxu0 0.0
      %348 = vmatprep.subr.mxu0 0.0
      %349 = vmatpush1.msra.mxu0 0.0
      %350 = vmatprep.subr.mxu0 0.0
      %351 = vmatpush1.msra.mxu0 0.0
      %352 = vmatprep.subr.mxu0 0.0
      %353 = vmatpush1.msra.mxu0 0.0
      %354 = vmatprep.subr.mxu0 0.0
      %355 = vmatpush1.msra.mxu0 0.0
      %356 = vmatprep.subr.mxu0 0.0
      %357 = vmatpush1.msra.mxu0 0.0
      %358 = vmatprep.subr.mxu0 0.0
      %359 = vmatpush1.msra.mxu0 0.0
      %360 = vmatprep.subr.mxu0 0.0
      %361 = vmatpush1.msra.mxu0 0.0
      %362 = vmatprep.subr.mxu0 0.0
      %363 = vmatpush1.msra.mxu0 0.0
      %364 = vmatprep.subr.mxu0 0.0
      %365 = vmatpush1.msra.mxu0 0.0
      %366 = vmatprep.subr.mxu0 0.0
      %367 = vmatpush1.msra.mxu0 0.0
      %368 = vmatprep.subr.mxu0 0.0
      %369 = vmatpush1.msra.mxu0 0.0
      %370 = vmatprep.subr.mxu0 0.0
      %371 = vmatpush1.msra.mxu0 0.0
      %372 = vmatprep.subr.mxu0 0.0
      %373 = vmatpush1.msra.mxu0 0.0
      %374 = vmatprep.subr.mxu0 0.0
      %375 = vmatpush1.msra.mxu0 0.0
      %376 = vmatprep.subr.mxu0 0.0
      %377 = vmatpush1.msra.mxu0 0.0
      %378 = vmatprep.subr.mxu0 0.0
      %379 = vmatpush1.msra.mxu0 0.0
      %380 = vmatprep.subr.mxu0 0.0
      %381 = vmatpush1.msra.mxu0 0.0
      %382 = vmatprep.subr.mxu0 0.0
      %383 = vmatpush1.msra.mxu0 0.0
      %384 = vmatprep.subr.mxu0 0.0
      %385 = vmatpush1.msra.mxu0 0.0
      %386 = vmatprep.subr.mxu0 0.0
      %387 = vmatpush1.msra.mxu0 0.0
      %388 = vmatprep.mubr.f32.mxu0 0.0
      %389 = vmatmul.mubr.f32.gmra.mrb[0].mxu0 %v322
      %v390 = vpop.f32.mrb[0].mxu0
      %v391 = vadd.f32 %v318, %v390
      %v392 = vpop.f32.mrb[0].mxu0
      %393 = vdwg.mxu0
      %394 = vst [vmem:[%s270] sm:$0xff] %v391
      %p395 = scmp.lt.s32.totalorder %s20, 1
      %s396 = scalar_select %p395, %s20, 1
      %p397 = scmp.lt.s32.totalorder %s21, 0
      %s398 = scalar_select %p397, %s21, 0
      %s399 = sadd.s32 %s398, %s396
      %s400 = smul.addr %s399, 8
      %s401 = scalar_lea.vmem %s5, %s400
      // Predicated region
      $region45: #{prenorm.1} parent=39 // pred_check
        %p402 = pneg %p168
      $region46: #{prenorm.1} parent=39 // pred_check_branch
        %404 = sbr.rel (%p402) target = $region48
      $region47: #{prenorm.1} parent=39 // pred_region
        _
      $region48: #{prenorm.1} parent=39 // pred_fallthru
        _
    $region40: #{prenorm.1} parent=5 // pred_fallthru
      _
    %p405 = scmp.le.s32.totalorder 2, %s11
    // Predicated region
    $region49: #{prenorm.1} parent=5 // pred_check
      %p406 = pneg %p405
    $region50: #{prenorm.1} parent=5 // pred_check_branch
      %408 = sbr.rel (%p406) target = $region52
    $region51: #{prenorm.1} parent=5 // pred_region
      %s409 = ssub.s32 %s11, 2
      // Predicated region
      $region53: #{prenorm.1} parent=51 // pred_check
        %p410 = pneg %p174
      $region54: #{prenorm.1} parent=51 // pred_check_branch
        %412 = sbr.rel (%p410) target = $region56
      $region55: #{prenorm.1} parent=51 // pred_region
        %p413 = scmp.lt.s32.totalorder %s22, 1
        %s414 = scalar_select %p413, %s22, 1
        %p415 = scmp.lt.s32.totalorder %s23, 0
        %s416 = scalar_select %p415, %s23, 0
        %s417 = sadd.s32 %s416, %s414
        %s418 = smul.addr %s417, 8
        %s419 = scalar_lea.vmem %s5, %s418
      $region56: #{prenorm.1} parent=51 // pred_fallthru
        _
    $region52: #{prenorm.1} parent=5 // pred_fallthru
      _
  $region6: #{prenorm.1} parent=0 // loop_footer
    %s15 = sadd.s32 1, %s11
  $region7: #{prenorm.1} parent=0 // loop_footer_branch
    %10 = sbr.rel target = $region3
  $region8: #{prenorm.1} parent=0 // loop_exit
    _

</llo_original>
